<compile_context>
chip_gen: v7x
topology: tpu7x:2x2x1
jax: 0.10.0
libtpu: 0.0.40
codegen_flags: <defaults>
</compile_context>

<pallas_src>
import functools

import jax
import jax.numpy as jnp
from jax.experimental import pallas as pl
from jax.experimental.pallas import tpu as pltpu

HIDDEN_LAYER = 256
IN_FEATURES = 4
OUT_FEATURES = 2
LANE = 128


def _round_up(n, m):
    return ((n + m - 1) // m) * m


def mlp_kernel(x_ref, w1t_ref, b1_ref, w2t_ref, b2_ref, o_ref):
    # x_ref  : (TB, 4)     batch in sublanes
    # w1t_ref: (4, 256)    layer-1 weight, pre-transposed (stationary MXU RHS)
    # b1_ref : (1, 256)
    # w2t_ref: (256, 2)    layer-2 weight, pre-transposed (stationary MXU RHS)
    # b2_ref : (1, 2)
    # o_ref  : (TB, 2)
    x = x_ref[...].astype(jnp.float32)

    # ---- layer 1 on the MXU (K=4, Mosaic pads the tiny contraction) ----
    h = jnp.dot(x, w1t_ref[...], preferred_element_type=jnp.float32)   # (TB, 256)
    # Bias + ReLU epilogue is the only VPU work left (f32 for v5e friendliness).
    h = jnp.maximum(h + b1_ref[...], 0.0)

    # ---- layer 2 on the MXU (K=256, N=2); small constant w2^T is stationary ----
    y = jnp.dot(h, w2t_ref[...], preferred_element_type=jnp.float32)   # (TB, 2)
    o_ref[...] = (y + b2_ref[...]).astype(o_ref.dtype)


@functools.partial(jax.jit, static_argnames=("block_b",))
def network_forward(x, w1, b1, w2, b2, *, block_b=4096):
    """x: (B, 4); w1: (256, 4); b1: (256,); w2: (2, 256); b2: (2,) -> (B, 2)."""
    B = x.shape[0]

    # Batch tile: lane-multiple (Mosaic (8,128) rule), large enough to amortize
    # per-grid-step overhead, and (for big B) >= 2 grid steps so both v7x
    # TensorCores get work.  Small batches use a single full-extent block, which
    # is always a legal block shape.
    block_b = max(LANE, _round_up(block_b, LANE))
    if B <= 4 * LANE:
        tb = B
    else:
        tb = min(block_b, _round_up(pl.cdiv(B, 2), LANE))
    grid_b = pl.cdiv(B, tb)

    # Tiny host-side weight prep (<= 4 KiB each); x itself is untouched.
    w1t = w1.T                                  # (4, 256)
    w2t = w2.T                                  # (256, 2)
    b1r = b1.reshape(1, HIDDEN_LAYER)
    b2r = b2.reshape(1, OUT_FEATURES)

    flops = 2 * B * (IN_FEATURES * HIDDEN_LAYER + HIDDEN_LAYER * OUT_FEATURES)
    bytes_accessed = 4 * (B * (IN_FEATURES + OUT_FEATURES)
                          + IN_FEATURES * HIDDEN_LAYER + HIDDEN_LAYER
                          + HIDDEN_LAYER * OUT_FEATURES + OUT_FEATURES)

    return pl.pallas_call(
        mlp_kernel,
        out_shape=jax.ShapeDtypeStruct((B, OUT_FEATURES), x.dtype),
        grid_spec=pltpu.PrefetchScalarGridSpec(
            num_scalar_prefetch=0,
            grid=(grid_b,),
            in_specs=[
                pl.BlockSpec((tb, IN_FEATURES), lambda i: (i, 0)),
                pl.BlockSpec((IN_FEATURES, HIDDEN_LAYER), lambda i: (0, 0)),
                pl.BlockSpec((1, HIDDEN_LAYER), lambda i: (0, 0)),
                pl.BlockSpec((HIDDEN_LAYER, OUT_FEATURES), lambda i: (0, 0)),
                pl.BlockSpec((1, OUT_FEATURES), lambda i: (0, 0)),
            ],
            out_specs=pl.BlockSpec((tb, OUT_FEATURES), lambda i: (i, 0)),
        ),
        compiler_params=pltpu.CompilerParams(
            dimension_semantics=("parallel",),
            vmem_limit_bytes=40 * 1024 * 1024,   # > v5e's 16 MiB default, < v7x's 64 MiB VMEM
        ),
        cost_estimate=pl.CostEstimate(
            flops=flops, transcendentals=0, bytes_accessed=bytes_accessed),
    )(x, w1t, b1r, w2t, b2r)


def init_params(key):
    """Deterministic init mimicking nn.Linear default (uniform +/- 1/sqrt(fan_in))."""
    k1, k2, k3, k4 = jax.random.split(key, 4)
    bound1 = 1.0 / jnp.sqrt(IN_FEATURES)
    bound2 = 1.0 / jnp.sqrt(HIDDEN_LAYER)
    w1 = jax.random.uniform(k1, (HIDDEN_LAYER, IN_FEATURES), jnp.float32,
                            -bound1, bound1)
    b1 = jax.random.uniform(k2, (HIDDEN_LAYER,), jnp.float32, -bound1, bound1)
    w2 = jax.random.uniform(k3, (OUT_FEATURES, HIDDEN_LAYER), jnp.float32,
                            -bound2, bound2)
    b2 = jax.random.uniform(k4, (OUT_FEATURES,), jnp.float32, -bound2, bound2)
    return w1, b1, w2, b2


def _ref(x, w1, b1, w2, b2):
    return jnp.maximum(x @ w1.T + b1, 0.0) @ w2.T + b2


if __name__ == "__main__":
    key = jax.random.PRNGKey(0)
    k_x, k_x2, k_p = jax.random.split(key, 3)
    w1, b1, w2, b2 = init_params(k_p)

    # Small batch (matches the PyTorch harness scale): single full-extent block.
    B = 8
    x = jax.random.normal(k_x, (B, IN_FEATURES), jnp.float32)
    out = jax.block_until_ready(network_forward(x, w1, b1, w2, b2))
    ref = _ref(x, w1, b1, w2, b2)
    assert out.shape == (B, OUT_FEATURES)
    # Tolerance covers MXU (bf16-pass) matmul precision differences vs the XLA ref.
    assert jnp.allclose(out, ref, atol=2e-2, rtol=2e-2), "small-batch mismatch"

    # Ragged multi-block batch: grid=(3,), edge tile partially out of bounds.
    B2 = 1337
    x2 = jax.random.normal(k_x2, (B2, IN_FEATURES), jnp.float32)
    out2 = jax.block_until_ready(
        network_forward(x2, w1, b1, w2, b2, block_b=512))
    ref2 = _ref(x2, w1, b1, w2, b2)
    assert out2.shape == (B2, OUT_FEATURES)
    assert jnp.allclose(out2, ref2, atol=2e-2, rtol=2e-2), "gridded mismatch"

    print("KERNEL_OK")
</pallas_src>

<mosaic_0001>
module attributes {stable_mosaic.version = 11 : i64} {
  func.func @mlp_kernel(%arg0: i32, %arg1: memref<8x4xf32, #tpu.memory_space<vmem>>, %arg2: memref<4x256xf32, #tpu.memory_space<vmem>>, %arg3: memref<1x256xf32, #tpu.memory_space<vmem>>, %arg4: memref<256x2xf32, #tpu.memory_space<vmem>>, %arg5: memref<1x2xf32, #tpu.memory_space<vmem>>, %arg6: memref<8x2xf32, #tpu.memory_space<vmem>>) attributes {dimension_semantics = [#tpu.dimension_semantics<parallel>], iteration_bounds = array<i64: 1>, scalar_prefetch = 0 : i64, scratch_operands = 0 : i64, tpu.core_type = #tpu.core_type<tc>, window_params = [{transform_indices = @transform_0, window_bounds = array<i64: 8, 4>}, {pipeline_mode = #tpu.pipeline_mode<synchronous>, transform_indices = @transform_1, window_bounds = array<i64: 4, 256>}, {pipeline_mode = #tpu.pipeline_mode<synchronous>, transform_indices = @transform_2, window_bounds = array<i64: 1, 256>}, {pipeline_mode = #tpu.pipeline_mode<synchronous>, transform_indices = @transform_3, window_bounds = array<i64: 256, 2>}, {pipeline_mode = #tpu.pipeline_mode<synchronous>, transform_indices = @transform_4, window_bounds = array<i64: 1, 2>}, {transform_indices = @transform_5, window_bounds = array<i64: 8, 2>}]} {
    %c0 = arith.constant 0 : index
    %c0_0 = arith.constant 0 : index
    %0 = vector.load %arg1[%c0, %c0_0] : memref<8x4xf32, #tpu.memory_space<vmem>>, vector<8x4xf32>
    %c0_1 = arith.constant 0 : index
    %c0_2 = arith.constant 0 : index
    %1 = vector.load %arg2[%c0_1, %c0_2] : memref<4x256xf32, #tpu.memory_space<vmem>>, vector<4x256xf32>
    %cst = arith.constant dense<0.000000e+00> : vector<8x256xf32>
    %2 = tpu.matmul %0, %1, %cst {dimension_numbers = #tpu.dot_dimension_numbers<[1], [0], [0], [1], [0, 0, 1, 1], [], []>} : vector<8x4xf32>, vector<4x256xf32>, vector<8x256xf32> -> vector<8x256xf32>
    %c0_3 = arith.constant 0 : index
    %c0_4 = arith.constant 0 : index
    %3 = vector.load %arg3[%c0_3, %c0_4] : memref<1x256xf32, #tpu.memory_space<vmem>>, vector<1x256xf32>
    %4 = vector.broadcast %3 : vector<1x256xf32> to vector<8x256xf32>
    %5 = arith.addf %2, %4 : vector<8x256xf32>
    %cst_5 = arith.constant 0.000000e+00 : f32
    %6 = vector.broadcast %cst_5 : f32 to vector<8x256xf32>
    %7 = arith.maximumf %5, %6 : vector<8x256xf32>
    %c0_6 = arith.constant 0 : index
    %c0_7 = arith.constant 0 : index
    %8 = vector.load %arg4[%c0_6, %c0_7] : memref<256x2xf32, #tpu.memory_space<vmem>>, vector<256x2xf32>
    %cst_8 = arith.constant dense<0.000000e+00> : vector<8x2xf32>
    %9 = tpu.matmul %7, %8, %cst_8 {dimension_numbers = #tpu.dot_dimension_numbers<[1], [0], [0], [1], [0, 0, 1, 1], [], []>} : vector<8x256xf32>, vector<256x2xf32>, vector<8x2xf32> -> vector<8x2xf32>
    %c0_9 = arith.constant 0 : index
    %c0_10 = arith.constant 0 : index
    %10 = vector.load %arg5[%c0_9, %c0_10] : memref<1x2xf32, #tpu.memory_space<vmem>>, vector<1x2xf32>
    %11 = vector.broadcast %10 : vector<1x2xf32> to vector<8x2xf32>
    %12 = arith.addf %9, %11 : vector<8x2xf32>
    %c0_11 = arith.constant 0 : index
    %c0_12 = arith.constant 0 : index
    %13 = vector.load %arg6[%c0_11, %c0_12] : memref<8x2xf32, #tpu.memory_space<vmem>>, vector<8x2xf32>
    tpu.vector_store %arg6[%c0_11, %c0_12], %12 {strides = array<i32>} : memref<8x2xf32, #tpu.memory_space<vmem>>, vector<8x2xf32>,
    return
  }
  func.func @transform_0(%arg0: i32) -> (i32, i32) {
    %c0_i32 = arith.constant 0 : i32
    %c0_i32_0 = arith.constant 0 : i32
    return %arg0, %c0_i32 : i32, i32
  }
  func.func @transform_1(%arg0: i32) -> (i32, i32) {
    %c0_i32 = arith.constant 0 : i32
    %c0_i32_0 = arith.constant 0 : i32
    %c0_i32_1 = arith.constant 0 : i32
    return %c0_i32, %c0_i32_0 : i32, i32
  }
  func.func @transform_2(%arg0: i32) -> (i32, i32) {
    %c0_i32 = arith.constant 0 : i32
    %c0_i32_0 = arith.constant 0 : i32
    %c0_i32_1 = arith.constant 0 : i32
    return %c0_i32, %c0_i32_0 : i32, i32
  }
  func.func @transform_3(%arg0: i32) -> (i32, i32) {
    %c0_i32 = arith.constant 0 : i32
    %c0_i32_0 = arith.constant 0 : i32
    %c0_i32_1 = arith.constant 0 : i32
    return %c0_i32, %c0_i32_0 : i32, i32
  }
  func.func @transform_4(%arg0: i32) -> (i32, i32) {
    %c0_i32 = arith.constant 0 : i32
    %c0_i32_0 = arith.constant 0 : i32
    %c0_i32_1 = arith.constant 0 : i32
    return %c0_i32, %c0_i32_0 : i32, i32
  }
  func.func @transform_5(%arg0: i32) -> (i32, i32) {
    %c0_i32 = arith.constant 0 : i32
    %c0_i32_0 = arith.constant 0 : i32
    return %arg0, %c0_i32 : i32, i32
  }
}

</mosaic_0001>

<llo_original>
// kernel: network_forward.1
$region0: #{network_forward.1}
  #allocation0 [shape = 'u32[]', space=smem, size = 0x4, offset = 0x4, fixed_abs, tag = 'smem constant byte address 0x4 - core index']
  #allocation1 [shape = 'u32[144,128]{1,0:T(1,128)}', space=vmem, size = 0x12000, scoped, tag = 'internal scratch']
  %s0 = inlined_call_operand.vmem [shape: f32[8,4], index: 0, kind: input, shape index: {}]
  %s1 = inlined_call_operand.vmem [shape: f32[4,256], index: 1, kind: input, shape index: {}]
  %s2 = inlined_call_operand.vmem [shape: f32[1,256], index: 2, kind: input, shape index: {}]
  %s3 = inlined_call_operand.vmem [shape: f32[256,2], index: 3, kind: input, shape index: {}]
  %s4 = inlined_call_operand.vmem [shape: f32[1,2], index: 4, kind: input, shape index: {}]
  %s5 = inlined_call_operand.vmem [shape: f32[8,2], index: 5, kind: output, shape index: {}]
  %s6 = sld [smem:[#allocation0]]
  $region30: #{network_forward.1} parent=0
    _
  %s8 = ssub.s32 1, %s6
  %s9 = scalar_select 0, %s8, %s6
  // Predicated region
  $region2: #{network_forward.1} parent=0 // pred_check
    _
  $region3: #{network_forward.1} parent=0 // pred_check_branch
    %11 = sbr.rel (0) target = $region5
  $region4: #{network_forward.1} parent=0 // pred_region
    _
  $region5: #{network_forward.1} parent=0 // pred_fallthru
    _
  // Predicated region
  $region6: #{network_forward.1} parent=0 // pred_check
    _
  $region7: #{network_forward.1} parent=0 // pred_check_branch
    %13 = sbr.rel (0) target = $region9
  $region8: #{network_forward.1} parent=0 // pred_region
    _
  $region9: #{network_forward.1} parent=0 // pred_fallthru
    _
  // Predicated region
  $region10: #{network_forward.1} parent=0 // pred_check
    _
  $region11: #{network_forward.1} parent=0 // pred_check_branch
    %15 = sbr.rel (0) target = $region13
  $region12: #{network_forward.1} parent=0 // pred_region
    _
  $region13: #{network_forward.1} parent=0 // pred_fallthru
    _
  // Predicated region
  $region14: #{network_forward.1} parent=0 // pred_check
    _
  $region15: #{network_forward.1} parent=0 // pred_check_branch
    %17 = sbr.rel (0) target = $region17
  $region16: #{network_forward.1} parent=0 // pred_region
    _
  $region17: #{network_forward.1} parent=0 // pred_fallthru
    _
  // Predicated region
  $region18: #{network_forward.1} parent=0 // pred_check
    _
  $region19: #{network_forward.1} parent=0 // pred_check_branch
    %19 = sbr.rel (0) target = $region21
  $region20: #{network_forward.1} parent=0 // pred_region
    _
  $region21: #{network_forward.1} parent=0 // pred_fallthru
    _
  %v20 = vld [vmem:[%s0] sm:$0xff]
  %v21 = vld [vmem:[%s1] sm:$0xff]
  %v22 = vld [vmem:[%s2] sm:$0x3]
  %v24 = vlaneseq
  %v25 = vshrl.u32 %v24, 7
  %v26 = vsub.s32 0, %v25
  %v27 = vrot.slane %v22, %v26
  %v28 = vlaneseq
  %v29 = vshrl.u32 %v28, 7
  %v30 = vsub.s32 1, %v29
  %v31 = vrot.slane %v22, %v30
  %v35 = vcombine.high %v21, %v21
  %vm36 = vcmask 31744
  %v38 = vsel %vm36, %v20, 0
  %vm40 = vcmask 1043456
  %v41 = vsel %vm40, %v21, 0
  %v43 = vsel %vm40, %v35, 0
  %45 = vmatprep.subr.mxu0 %v43
  %46 = vmatpush1.msra.mxu0 %v41
  %47 = vmatprep.subr.mxu0 0.0
  %48 = vmatpush1.msra.mxu0 0.0
  %49 = vmatprep.subr.mxu0 0.0
  %50 = vmatpush1.msra.mxu0 0.0
  %51 = vmatprep.subr.mxu0 0.0
  %52 = vmatpush1.msra.mxu0 0.0
  %53 = vmatprep.subr.mxu0 0.0
  %54 = vmatpush1.msra.mxu0 0.0
  %55 = vmatprep.subr.mxu0 0.0
  %56 = vmatpush1.msra.mxu0 0.0
  %57 = vmatprep.subr.mxu0 0.0
  %58 = vmatpush1.msra.mxu0 0.0
  %59 = vmatprep.subr.mxu0 0.0
  %60 = vmatpush1.msra.mxu0 0.0
  %61 = vmatprep.subr.mxu0 0.0
  %62 = vmatpush1.msra.mxu0 0.0
  %63 = vmatprep.subr.mxu0 0.0
  %64 = vmatpush1.msra.mxu0 0.0
  %65 = vmatprep.subr.mxu0 0.0
  %66 = vmatpush1.msra.mxu0 0.0
  %67 = vmatprep.subr.mxu0 0.0
  %68 = vmatpush1.msra.mxu0 0.0
  %69 = vmatprep.subr.mxu0 0.0
  %70 = vmatpush1.msra.mxu0 0.0
  %71 = vmatprep.subr.mxu0 0.0
  %72 = vmatpush1.msra.mxu0 0.0
  %73 = vmatprep.subr.mxu0 0.0
  %74 = vmatpush1.msra.mxu0 0.0
  %75 = vmatprep.subr.mxu0 0.0
  %76 = vmatpush1.msra.mxu0 0.0
  %77 = vmatprep.subr.mxu0 0.0
  %78 = vmatpush1.msra.mxu0 0.0
  %79 = vmatprep.subr.mxu0 0.0
  %80 = vmatpush1.msra.mxu0 0.0
  %81 = vmatprep.subr.mxu0 0.0
  %82 = vmatpush1.msra.mxu0 0.0
  %83 = vmatprep.subr.mxu0 0.0
  %84 = vmatpush1.msra.mxu0 0.0
  %85 = vmatprep.subr.mxu0 0.0
  %86 = vmatpush1.msra.mxu0 0.0
  %87 = vmatprep.subr.mxu0 0.0
  %88 = vmatpush1.msra.mxu0 0.0
  %89 = vmatprep.subr.mxu0 0.0
  %90 = vmatpush1.msra.mxu0 0.0
  %91 = vmatprep.subr.mxu0 0.0
  %92 = vmatpush1.msra.mxu0 0.0
  %93 = vmatprep.subr.mxu0 0.0
  %94 = vmatpush1.msra.mxu0 0.0
  %95 = vmatprep.subr.mxu0 0.0
  %96 = vmatpush1.msra.mxu0 0.0
  %97 = vmatprep.subr.mxu0 0.0
  %98 = vmatpush1.msra.mxu0 0.0
  %99 = vmatprep.subr.mxu0 0.0
  %100 = vmatpush1.msra.mxu0 0.0
  %101 = vmatprep.subr.mxu0 0.0
  %102 = vmatpush1.msra.mxu0 0.0
  %103 = vmatprep.subr.mxu0 0.0
  %104 = vmatpush1.msra.mxu0 0.0
  %105 = vmatprep.subr.mxu0 0.0
  %106 = vmatpush1.msra.mxu0 0.0
  %107 = vmatprep.subr.mxu0 0.0
  %108 = vmatpush1.msra.mxu0 0.0
  %109 = vmatprep.mubr.f32.mxu0 0.0
  %110 = vmatmul.mubr.f32.gmra.mrb[0].mxu0 %v38
  %v111 = vpop.f32.mrb[0].mxu0
  %v112 = vadd.f32 %v27, %v111
  %v113 = vpop.f32.mrb[0].mxu0
  %v114 = vadd.f32 %v31, %v113
  %115 = vdwg.mxu0
  %v116 = vmax.f32 %v112, 0.0
  %v117 = vmax.f32 %v114, 0.0
  %v118 = vld [vmem:[%s3] sm:$0xff]
  %v119 = vld [vmem:[%s3 + $0x8] sm:$0xff]
  %v120 = vld [vmem:[%s3 + $0x10] sm:$0xff]
  %v121 = vld [vmem:[%s3 + $0x18] sm:$0xff]
  %v122 = vld [vmem:[%s3 + $0x20] sm:$0xff]
  %v123 = vld [vmem:[%s3 + $0x28] sm:$0xff]
  %v124 = vld [vmem:[%s3 + $0x30] sm:$0xff]
  %v125 = vld [vmem:[%s3 + $0x38] sm:$0xff]
  %v126 = vld [vmem:[%s3 + $0x40] sm:$0xff]
  %v127 = vld [vmem:[%s3 + $0x48] sm:$0xff]
  %v128 = vld [vmem:[%s3 + $0x50] sm:$0xff]
  %v129 = vld [vmem:[%s3 + $0x58] sm:$0xff]
  %v130 = vld [vmem:[%s3 + $0x60] sm:$0xff]
  %v131 = vld [vmem:[%s3 + $0x68] sm:$0xff]
  %v132 = vld [vmem:[%s3 + $0x70] sm:$0xff]
  %v133 = vld [vmem:[%s3 + $0x78] sm:$0xff]
  %v134 = vld [vmem:[%s3 + $0x80] sm:$0xff]
  %v135 = vld [vmem:[%s3 + $0x88] sm:$0xff]
  %v136 = vld [vmem:[%s3 + $0x90] sm:$0xff]
  %v137 = vld [vmem:[%s3 + $0x98] sm:$0xff]
  %v138 = vld [vmem:[%s3 + $0xa0] sm:$0xff]
  %v139 = vld [vmem:[%s3 + $0xa8] sm:$0xff]
  %v140 = vld [vmem:[%s3 + $0xb0] sm:$0xff]
  %v141 = vld [vmem:[%s3 + $0xb8] sm:$0xff]
  %v142 = vld [vmem:[%s3 + $0xc0] sm:$0xff]
  %v143 = vld [vmem:[%s3 + $0xc8] sm:$0xff]
  %v144 = vld [vmem:[%s3 + $0xd0] sm:$0xff]
  %v145 = vld [vmem:[%s3 + $0xd8] sm:$0xff]
  %v146 = vld [vmem:[%s3 + $0xe0] sm:$0xff]
  %v147 = vld [vmem:[%s3 + $0xe8] sm:$0xff]
  %v148 = vld [vmem:[%s3 + $0xf0] sm:$0xff]
  %v149 = vld [vmem:[%s3 + $0xf8] sm:$0xff]
  %v150 = vld [vmem:[%s4] sm:$0x1]
  %v152 = vlaneseq
  %v153 = vshrl.u32 %v152, 7
  %v154 = vsub.s32 0, %v153
  %v155 = vrot.slane %v150, %v154
  %157 = vmatprep.subr.mxu0 0.0
  %158 = vmatpush1.msra.mxu0 %v118
  %159 = vmatprep.subr.mxu0 0.0
  %160 = vmatpush1.msra.mxu0 %v119
  %161 = vmatprep.subr.mxu0 0.0
  %162 = vmatpush1.msra.mxu0 %v120
  %163 = vmatprep.subr.mxu0 0.0
  %164 = vmatpush1.msra.mxu0 %v121
  %165 = vmatprep.subr.mxu0 0.0
  %166 = vmatpush1.msra.mxu0 %v122
  %167 = vmatprep.subr.mxu0 0.0
  %168 = vmatpush1.msra.mxu0 %v123
  %169 = vmatprep.subr.mxu0 0.0
  %170 = vmatpush1.msra.mxu0 %v124
  %171 = vmatprep.subr.mxu0 0.0
  %172 = vmatpush1.msra.mxu0 %v125
  %173 = vmatprep.subr.mxu0 0.0
  %174 = vmatpush1.msra.mxu0 %v126
  %175 = vmatprep.subr.mxu0 0.0
  %176 = vmatpush1.msra.mxu0 %v127
  %177 = vmatprep.subr.mxu0 0.0
  %178 = vmatpush1.msra.mxu0 %v128
  %179 = vmatprep.subr.mxu0 0.0
  %180 = vmatpush1.msra.mxu0 %v129
  %181 = vmatprep.subr.mxu0 0.0
  %182 = vmatpush1.msra.mxu0 %v130
  %183 = vmatprep.subr.mxu0 0.0
  %184 = vmatpush1.msra.mxu0 %v131
  %185 = vmatprep.subr.mxu0 0.0
  %186 = vmatpush1.msra.mxu0 %v132
  %187 = vmatprep.subr.mxu0 0.0
  %188 = vmatpush1.msra.mxu0 %v133
  %189 = vmatprep.subr.mxu0 0.0
  %190 = vmatpush1.msra.mxu0 %v134
  %191 = vmatprep.subr.mxu0 0.0
  %192 = vmatpush1.msra.mxu0 %v135
  %193 = vmatprep.subr.mxu0 0.0
  %194 = vmatpush1.msra.mxu0 %v136
  %195 = vmatprep.subr.mxu0 0.0
  %196 = vmatpush1.msra.mxu0 %v137
  %197 = vmatprep.subr.mxu0 0.0
  %198 = vmatpush1.msra.mxu0 %v138
  %199 = vmatprep.subr.mxu0 0.0
  %200 = vmatpush1.msra.mxu0 %v139
  %201 = vmatprep.subr.mxu0 0.0
  %202 = vmatpush1.msra.mxu0 %v140
  %203 = vmatprep.subr.mxu0 0.0
  %204 = vmatpush1.msra.mxu0 %v141
  %205 = vmatprep.subr.mxu0 0.0
  %206 = vmatpush1.msra.mxu0 %v142
  %207 = vmatprep.subr.mxu0 0.0
  %208 = vmatpush1.msra.mxu0 %v143
  %209 = vmatprep.subr.mxu0 0.0
  %210 = vmatpush1.msra.mxu0 %v144
  %211 = vmatprep.subr.mxu0 0.0
  %212 = vmatpush1.msra.mxu0 %v145
  %213 = vmatprep.subr.mxu0 0.0
  %214 = vmatpush1.msra.mxu0 %v146
  %215 = vmatprep.subr.mxu0 0.0
  %216 = vmatpush1.msra.mxu0 %v147
  %217 = vmatprep.subr.mxu0 0.0
  %218 = vmatpush1.msra.mxu0 %v148
  %219 = vmatprep.subr.mxu0 0.0
  %220 = vmatpush1.msra.mxu0 %v149
  %221 = vmatprep.mubr.f32.mxu0 %v117
  %222 = vmatmul.mubr.f32.gmra.mrb[0].mxu0 %v116
  %v223 = vpop.f32.mrb[0].mxu0
  %v224 = vadd.f32 %v155, %v223
  %v225 = vpop.f32.mrb[0].mxu0
  %226 = vdwg.mxu0
  %vm227 = vcmask 15360
  %228 = vst.msk [vmem:[%s5] sm:$0xff] %vm227, %v224
  // Predicated region
  $region22: #{network_forward.1} parent=0 // pred_check
    _
  $region23: #{network_forward.1} parent=0 // pred_check_branch
    %230 = sbr.rel (0) target = $region25
  $region24: #{network_forward.1} parent=0 // pred_region
    _
  $region25: #{network_forward.1} parent=0 // pred_fallthru
    _
  // Predicated region
  $region26: #{network_forward.1} parent=0 // pred_check
    _
  $region27: #{network_forward.1} parent=0 // pred_check_branch
    %232 = sbr.rel (0) target = $region29
  $region28: #{network_forward.1} parent=0 // pred_region
    _
  $region29: #{network_forward.1} parent=0 // pred_fallthru
    _

</llo_original>
